<compile_context>
chip_gen: v7x
topology: tpu7x:2x2x1
jax: 0.10.0
libtpu: 0.0.40
codegen_flags: <defaults>
</compile_context>

<pallas_src>
import functools

import jax
import jax.numpy as jnp
from jax.experimental import pallas as pl
from jax.experimental.pallas import tpu as pltpu


def _ce_label_smooth_kernel(x_ref, t_ref, w_ref, o_ref, acc_ref, *,
                            epsilon, num_classes, true_n, tile_n):
    # x_ref: (tile_n, C) logits block         (VMEM, streamed)
    # t_ref: (tile_n, 1) int32 labels block   (VMEM, tiny)
    # w_ref: (1, C) f32 class weights         (VMEM, resident: index_map = (0, 0))
    # o_ref: (1,) f32 scalar output           (SMEM, written once at last step)
    # acc_ref: (1, 1) f32 running loss sum    (VMEM scratch, persists across grid)
    pid = pl.program_id(0)
    last = pl.num_programs(0) - 1

    @pl.when(pid == 0)
    def _init():
        acc_ref[...] = jnp.zeros_like(acc_ref)

    # Single up-cast of the whole tile (keeps exp/log on the f32 EUP path).
    x = x_ref[...].astype(jnp.float32)                       # (tn, C)
    tn, c = x.shape

    # Numerically-stable log-softmax pieces (shifted <= 0, so exp never overflows,
    # even for garbage rows in a padded last block).
    m = jnp.max(x, axis=1, keepdims=True)                    # (tn, 1)
    shifted = x - m                                          # (tn, C)
    lse = jnp.log(jnp.sum(jnp.exp(shifted), axis=1, keepdims=True))  # (tn, 1)

    # Smoothed one-hot fused with the per-class weights:
    #   weighted[n, c] = w[c] * ((1 - eps) * onehot[n, c] + eps / num_classes)
    class_iota = jax.lax.broadcasted_iota(jnp.int32, (tn, c), 1)
    onehot = (class_iota == t_ref[...]).astype(jnp.float32)  # (tn, C)
    weighted = w_ref[...] * ((1.0 - epsilon) * onehot + (epsilon / num_classes))

    # Per-row loss = -sum_c weighted * log_probs ; one lane-axis reduce, no (C,)
    # intermediate, no explicit log_probs buffer beyond (shifted - lse).
    per_row = -jnp.sum(weighted * (shifted - lse), axis=1, keepdims=True)  # (tn, 1)

    # Mask out padded rows of the (possibly partial) last block.
    row_ids = pid * tile_n + jax.lax.broadcasted_iota(jnp.int32, (tn, 1), 0)
    per_row = jnp.where(row_ids < true_n, per_row, 0.0)

    # Accumulate this block's batch-sum, fully vectorized ((tn,1) -> (1,1)).
    acc_ref[...] += jnp.sum(per_row, axis=0, keepdims=True)

    @pl.when(pid == last)
    def _finalize():
        # Fold the 1/N batch mean in once, then store the scalar to SMEM.
        total = acc_ref[...] * (1.0 / true_n)                # (1, 1)
        o_ref[0] = jnp.sum(total)


def _choose_tile_n(n, c):
    """Pick a batch tile: big enough to amortize per-step overhead, small enough
    that the double-buffered f32 logits stream + in-kernel temporaries stay far
    below the smallest (v7x, 64 MiB) VMEM budget."""
    budget_rows = max(8, (2 * 1024 * 1024) // max(1, c * 4))  # ~2 MiB of logits/tile
    tile = min(512, budget_rows)
    tile = max(8, (tile // 8) * 8)
    if tile >= n:
        return n            # single full block (always layout-legal)
    return tile


def cross_entropy_label_smooth(inputs, targets, weights, epsilon, num_classes,
                               tile_n=None):
    """inputs: (N, C) float logits, targets: (N,) int labels, weights: (C,) float."""
    n, c = inputs.shape
    assert num_classes == c, "num_classes must match inputs.shape[1]"

    if tile_n is None:
        tile_n = _choose_tile_n(n, c)
    if tile_n >= n:
        tile_n = n                                  # full batch in one block
    else:
        tile_n = max(8, (tile_n // 8) * 8)          # keep sublane-aligned blocks
    grid = (pl.cdiv(n, tile_n),)

    t2d = targets.astype(jnp.int32).reshape(n, 1)
    w2d = weights.astype(jnp.float32).reshape(1, c)

    kernel = functools.partial(
        _ce_label_smooth_kernel,
        epsilon=float(epsilon),
        num_classes=int(num_classes),
        true_n=int(n),
        tile_n=int(tile_n),
    )

    out = pl.pallas_call(
        kernel,
        out_shape=jax.ShapeDtypeStruct((1,), jnp.float32),
        grid_spec=pltpu.PrefetchScalarGridSpec(
            num_scalar_prefetch=0,
            grid=grid,
            in_specs=[
                pl.BlockSpec((tile_n, c), lambda i: (i, 0)),   # logits: streamed
                pl.BlockSpec((tile_n, 1), lambda i: (i, 0)),   # labels: tiny block
                pl.BlockSpec((1, c), lambda i: (0, 0)),        # weights: resident
            ],
            out_specs=pl.BlockSpec(memory_space=pltpu.SMEM),   # scalar loss in SMEM
            scratch_shapes=[pltpu.VMEM((1, 1), jnp.float32)],  # running loss sum
        ),
        compiler_params=pltpu.CompilerParams(
            dimension_semantics=("arbitrary",),                # reduction axis
            vmem_limit_bytes=32 * 1024 * 1024,
        ),
    )(inputs, t2d, w2d)
    return out[0]


def _reference(inputs, targets, weights, epsilon, num_classes):
    log_probs = jax.nn.log_softmax(inputs.astype(jnp.float32), axis=1)
    onehot = jax.nn.one_hot(targets, num_classes, dtype=jnp.float32)
    smooth = (1.0 - epsilon) * onehot + epsilon / num_classes
    return jnp.sum(jnp.mean(-smooth * log_probs, axis=0) * weights)


if __name__ == "__main__":
    eps = 0.1

    # Config 1: exercises the batch grid (3 steps) and partial-last-block masking.
    n1, c1 = 40, 128
    k1, k2, k3 = jax.random.split(jax.random.PRNGKey(0), 3)
    x1 = jax.random.normal(k1, (n1, c1), dtype=jnp.float32)
    t1 = jax.random.randint(k2, (n1,), 0, c1, dtype=jnp.int32)
    w1 = jax.random.uniform(k3, (c1,), dtype=jnp.float32) + 0.5

    loss1 = jax.block_until_ready(
        cross_entropy_label_smooth(x1, t1, w1, eps, c1, tile_n=16))
    ref1 = _reference(x1, t1, w1, eps, c1)
    assert jnp.allclose(loss1, ref1, atol=1e-5, rtol=1e-4), (loss1, ref1)

    # Config 2: tiny original-style shapes, auto tile (single grid step).
    n2, c2 = 8, 16
    k4, k5, k6 = jax.random.split(jax.random.PRNGKey(1), 3)
    x2 = jax.random.normal(k4, (n2, c2), dtype=jnp.float32)
    t2 = jax.random.randint(k5, (n2,), 0, c2, dtype=jnp.int32)
    w2 = jax.random.uniform(k6, (c2,), dtype=jnp.float32) + 0.5

    loss2 = jax.block_until_ready(
        cross_entropy_label_smooth(x2, t2, w2, eps, c2))
    ref2 = _reference(x2, t2, w2, eps, c2)
    assert jnp.allclose(loss2, ref2, atol=1e-5, rtol=1e-4), (loss2, ref2)

    print("KERNEL_OK")
</pallas_src>

<mosaic_0001>
module attributes {stable_mosaic.version = 11 : i64} {
  func.func @_ce_label_smooth_kernel(%arg0: i32, %arg1: memref<16x128xf32, #tpu.memory_space<vmem>>, %arg2: memref<16x1xi32, #tpu.memory_space<vmem>>, %arg3: memref<1x128xf32, #tpu.memory_space<vmem>>, %arg4: memref<1xf32, #tpu.memory_space<smem>>, %arg5: memref<1x1xf32, #tpu.memory_space<vmem>>) attributes {dimension_semantics = [#tpu.dimension_semantics<arbitrary>], iteration_bounds = array<i64: 3>, scalar_prefetch = 0 : i64, scratch_operands = 1 : i64, tpu.core_type = #tpu.core_type<tc>, window_params = [{transform_indices = @transform_0, window_bounds = array<i64: 16, 128>}, {transform_indices = @transform_1, window_bounds = array<i64: 16, 1>}, {pipeline_mode = #tpu.pipeline_mode<synchronous>, transform_indices = @transform_2, window_bounds = array<i64: 1, 128>}, {transform_indices = @transform_3, window_bounds = array<i64: 1>}]} {
    %c0_i32 = arith.constant 0 : i32
    %0 = arith.cmpi eq, %arg0, %c0_i32 : i32
    %1 = arith.extui %0 : i1 to i32
    %c0_i32_0 = arith.constant 0 : i32
    %2 = arith.cmpi ne, %1, %c0_i32_0 : i32
    scf.if %2 {
      %cst_18 = arith.constant 0.000000e+00 : f32
      %48 = vector.broadcast %cst_18 : f32 to vector<1x1xf32>
      %c0_19 = arith.constant 0 : index
      %c0_20 = arith.constant 0 : index
      %49 = vector.load %arg5[%c0_19, %c0_20] : memref<1x1xf32, #tpu.memory_space<vmem>>, vector<1x1xf32>
      tpu.vector_store %arg5[%c0_19, %c0_20], %48 {strides = array<i32>} : memref<1x1xf32, #tpu.memory_space<vmem>>, vector<1x1xf32>,
    } else {
    }
    %c0 = arith.constant 0 : index
    %c0_1 = arith.constant 0 : index
    %3 = vector.load %arg1[%c0, %c0_1] : memref<16x128xf32, #tpu.memory_space<vmem>>, vector<16x128xf32>
    %cst = arith.constant dense<0xFF800000> : vector<16xf32>
    %4 = vector.multi_reduction <maximumf>, %3, %cst [1] : vector<16x128xf32> to vector<16xf32>
    %5 = vector.shape_cast %4 : vector<16xf32> to vector<16x1xf32>
    %6 = vector.broadcast %5 : vector<16x1xf32> to vector<16x128xf32>
    %7 = arith.subf %3, %6 : vector<16x128xf32>
    %8 = math.exp %7 : vector<16x128xf32>
    %cst_2 = arith.constant dense<0.000000e+00> : vector<16xf32>
    %9 = vector.multi_reduction <add>, %8, %cst_2 [1] : vector<16x128xf32> to vector<16xf32>
    %10 = vector.shape_cast %9 : vector<16xf32> to vector<16x1xf32>
    %11 = math.log %10 : vector<16x1xf32>
    %12 = tpu.iota {dimensions = array<i32: 1>} : vector<16x128xi32>
    %c0_3 = arith.constant 0 : index
    %c0_4 = arith.constant 0 : index
    %13 = vector.load %arg2[%c0_3, %c0_4] : memref<16x1xi32, #tpu.memory_space<vmem>>, vector<16x1xi32>
    %14 = vector.broadcast %13 : vector<16x1xi32> to vector<16x128xi32>
    %15 = arith.cmpi eq, %12, %14 : vector<16x128xi32>
    %16 = arith.extui %15 : vector<16x128xi1> to vector<16x128xi32>
    %17 = arith.sitofp %16 : vector<16x128xi32> to vector<16x128xf32>
    %c0_5 = arith.constant 0 : index
    %c0_6 = arith.constant 0 : index
    %18 = vector.load %arg3[%c0_5, %c0_6] : memref<1x128xf32, #tpu.memory_space<vmem>>, vector<1x128xf32>
    %cst_7 = arith.constant 0.899999976 : f32
    %19 = vector.broadcast %cst_7 : f32 to vector<16x128xf32>
    %20 = arith.mulf %19, %17 : vector<16x128xf32>
    %cst_8 = arith.constant 7.812500e-04 : f32
    %21 = vector.broadcast %cst_8 : f32 to vector<16x128xf32>
    %22 = arith.addf %20, %21 : vector<16x128xf32>
    %23 = vector.broadcast %18 : vector<1x128xf32> to vector<16x128xf32>
    %24 = arith.mulf %23, %22 : vector<16x128xf32>
    %25 = vector.broadcast %11 : vector<16x1xf32> to vector<16x128xf32>
    %26 = arith.subf %7, %25 : vector<16x128xf32>
    %27 = arith.mulf %24, %26 : vector<16x128xf32>
    %cst_9 = arith.constant dense<0.000000e+00> : vector<16xf32>
    %28 = vector.multi_reduction <add>, %27, %cst_9 [1] : vector<16x128xf32> to vector<16xf32>
    %29 = vector.shape_cast %28 : vector<16xf32> to vector<16x1xf32>
    %cst_10 = arith.constant 0.000000e+00 : f32
    %30 = vector.broadcast %cst_10 : f32 to vector<16x1xf32>
    %31 = arith.subf %30, %29 : vector<16x1xf32>
    %c16_i32 = arith.constant 16 : i32
    %32 = arith.muli %arg0, %c16_i32 : i32
    %33 = tpu.iota {dimensions = array<i32: 0>} : vector<16x1xi32>
    %34 = vector.broadcast %32 : i32 to vector<16x1xi32>
    %35 = arith.addi %34, %33 : vector<16x1xi32>
    %c40_i32 = arith.constant 40 : i32
    %36 = vector.broadcast %c40_i32 : i32 to vector<16x1xi32>
    %37 = arith.cmpi slt, %35, %36 : vector<16x1xi32>
    %cst_11 = arith.constant 0.000000e+00 : f32
    %38 = vector.broadcast %cst_11 : f32 to vector<16x1xf32>
    %39 = arith.select %37, %31, %38 : vector<16x1xi1>, vector<16x1xf32>
    %c0_12 = arith.constant 0 : index
    %c0_13 = arith.constant 0 : index
    %40 = vector.load %arg5[%c0_12, %c0_13] : memref<1x1xf32, #tpu.memory_space<vmem>>, vector<1x1xf32>
    %cst_14 = arith.constant dense<0.000000e+00> : vector<1xf32>
    %41 = vector.multi_reduction <add>, %39, %cst_14 [0] : vector<16x1xf32> to vector<1xf32>
    %42 = vector.shape_cast %41 : vector<1xf32> to vector<1x1xf32>
    %43 = arith.addf %40, %42 : vector<1x1xf32>
    %c0_15 = arith.constant 0 : index
    %c0_16 = arith.constant 0 : index
    %44 = vector.load %arg5[%c0_15, %c0_16] : memref<1x1xf32, #tpu.memory_space<vmem>>, vector<1x1xf32>
    tpu.vector_store %arg5[%c0_15, %c0_16], %43 {strides = array<i32>} : memref<1x1xf32, #tpu.memory_space<vmem>>, vector<1x1xf32>,
    %c2_i32 = arith.constant 2 : i32
    %45 = arith.cmpi eq, %arg0, %c2_i32 : i32
    %46 = arith.extui %45 : i1 to i32
    %c0_i32_17 = arith.constant 0 : i32
    %47 = arith.cmpi ne, %46, %c0_i32_17 : i32
    scf.if %47 {
      %c0_18 = arith.constant 0 : index
      %c0_19 = arith.constant 0 : index
      %48 = vector.load %arg5[%c0_18, %c0_19] : memref<1x1xf32, #tpu.memory_space<vmem>>, vector<1x1xf32>
      %cst_20 = arith.constant 2.500000e-02 : f32
      %49 = vector.broadcast %cst_20 : f32 to vector<1x1xf32>
      %50 = arith.mulf %48, %49 : vector<1x1xf32>
      %51 = vector.shape_cast %50 : vector<1x1xf32> to vector<1x1x1xf32>
      %cst_21 = arith.constant dense<0.000000e+00> : vector<1xf32>
      %52 = vector.multi_reduction <add>, %51, %cst_21 [1, 2] : vector<1x1x1xf32> to vector<1xf32>
      %53 = vector.shape_cast %52 : vector<1xf32> to vector<1x1x1xf32>
      %54 = vector.extract %53[0, 0, 0] : f32 from vector<1x1x1xf32>
      %c0_22 = arith.constant 0 : index
      %55 = memref.load %arg4[%c0_22] : memref<1xf32, #tpu.memory_space<smem>>
      memref.store %54, %arg4[%c0_22] : memref<1xf32, #tpu.memory_space<smem>>
    } else {
    }
    return
  }
  func.func @transform_0(%arg0: i32) -> (i32, i32) {
    %c0_i32 = arith.constant 0 : i32
    %c0_i32_0 = arith.constant 0 : i32
    return %arg0, %c0_i32 : i32, i32
  }
  func.func @transform_1(%arg0: i32) -> (i32, i32) {
    %c0_i32 = arith.constant 0 : i32
    %c0_i32_0 = arith.constant 0 : i32
    return %arg0, %c0_i32 : i32, i32
  }
  func.func @transform_2(%arg0: i32) -> (i32, i32) {
    %c0_i32 = arith.constant 0 : i32
    %c0_i32_0 = arith.constant 0 : i32
    %c0_i32_1 = arith.constant 0 : i32
    return %c0_i32, %c0_i32_0 : i32, i32
  }
  func.func @transform_3(%arg0: i32) -> i32 {
    %c0_i32 = arith.constant 0 : i32
    %c0_i32_0 = arith.constant 0 : i32
    return %c0_i32 : i32
  }
}

</mosaic_0001>

<llo_original>
// kernel: tpu_custom_call.1
$region0: #{tpu_custom_call.1}
  #allocation0 [shape = 'u32[]', space=smem, size = 0x4, offset = 0x4, fixed_abs, tag = 'smem constant byte address 0x4 - core index']
  #allocation1 [shape = 'u32[144,128]{1,0:T(1,128)}', space=vmem, size = 0x12000, scoped, tag = 'internal scratch']
  #allocation2 [shape = 'f32[1,1]{1,0:T(1,128)}', space=vmem, size = 0x200, scoped, tag = 'scratch operand']
  %s0 = inlined_call_operand.vmem [shape: f32[40,128], index: 0, kind: input, shape index: {}]
  %s1 = inlined_call_operand.vmem [shape: s32[40,1], index: 1, kind: input, shape index: {}]
  %s2 = inlined_call_operand.vmem [shape: f32[1,128], index: 2, kind: input, shape index: {}]
  %s3 = inlined_call_operand.hbm [shape: f32[1], index: 3, kind: output, shape index: {}]
  %s4 = sld [smem:[#allocation0]]
  $region53: #{tpu_custom_call.1} parent=0
    _
  %s6 = ssub.s32 1, %s4
  %s7 = scalar_select 0, %s6, %s4
  $region1: #{tpu_custom_call.1} parent=0
    #allocation3 [shape = 'u8[512]{0}', space=smem, size = 0x200, scoped, tag = 'output window, operand 0, single buffered']
    #allocation4 [shape = 's32[2]{0}', space=sflag, size = 0x8, scoped, tag = 'scoped memory for tpu_custom_call.1']
    %8 = vsyncpa [#allocation4], 0
    loop: start=0, step=1, limit=5
    $region2: #{tpu_custom_call.1} parent=1 // loop_pre_header
      _
    $region3: #{tpu_custom_call.1} parent=1 // loop_header
      %s10 = sphi 0, %s14
      %p11 = scmp.ge.s32.totalorder %s10, 5
      %s20 = sphi 0, %s22
      %s23 = sphi 0, %s20
      %s24 = sphi 0, %s23
      %s40 = sphi 0, %s24
      %s46 = sphi 0, %s48
      %s49 = sphi 0, %s46
      %s50 = sphi 0, %s49
      %s66 = sphi 0, %s50
      %s70 = sphi 0, %s70
      %s72 = sphi 0, %s70
      %s73 = sphi 0, %s72
      %s87 = sphi 0, %s73
      %s91 = sphi 0, %s91
      %s93 = sphi 0, %s91
      %s94 = sphi 0, %s93
      %s108 = sphi 0, %s94
    $region4: #{tpu_custom_call.1} parent=1 // loop_header_branch
      %13 = sbr.rel (%p11) target = $region8
    $region5: #{tpu_custom_call.1} parent=1 // loop_body
      %s15 = ssub.s32 %s10, 1
      %s16 = ssub.s32 %s10, 2
      %s17 = sadd.s32 %s10, 1
      %s18 = ssub.s32 %s10, %s17
      %p19 = scmp.eq.s32.totalorder %s18, 0
      %s21 = sadd.s32 %s20, 1
      %s22 = scalar_select %p19, %s20, %s21
      %p25 = pneg %p19
      %p26 = scmp.eq.s32.totalorder %s10, 2
      %p27 = por %p25, %p26
      %p28 = scmp.ne.s32.totalorder %s20, %s23
      %p29 = scmp.eq.s32.totalorder %s10, 0
      %p30 = por %p28, %p29
      %p31 = scmp.ne.s32.totalorder %s20, %s23
      %p32 = scmp.eq.s32.totalorder %s15, 2
      %p33 = por %p31, %p32
      %p34 = scmp.ne.s32.totalorder %s23, %s24
      %p35 = scmp.eq.s32.totalorder %s15, 0
      %p36 = por %p34, %p35
      %p37 = scmp.ne.s32.totalorder %s23, %s24
      %p38 = scmp.eq.s32.totalorder %s16, 2
      %p39 = por %p37, %p38
      %p41 = scmp.ne.s32.totalorder %s24, %s40
      %p42 = scmp.eq.s32.totalorder %s16, 0
      %p43 = por %p41, %p42
      %s44 = ssub.s32 %s10, %s17
      %p45 = scmp.eq.s32.totalorder %s44, 0
      %s47 = sadd.s32 %s46, 1
      %s48 = scalar_select %p45, %s46, %s47
      %p51 = pneg %p45
      %p52 = scmp.eq.s32.totalorder %s10, 2
      %p53 = por %p51, %p52
      %p54 = scmp.ne.s32.totalorder %s46, %s49
      %p55 = scmp.eq.s32.totalorder %s10, 0
      %p56 = por %p54, %p55
      %p57 = scmp.ne.s32.totalorder %s46, %s49
      %p58 = scmp.eq.s32.totalorder %s15, 2
      %p59 = por %p57, %p58
      %p60 = scmp.ne.s32.totalorder %s49, %s50
      %p61 = scmp.eq.s32.totalorder %s15, 0
      %p62 = por %p60, %p61
      %p63 = scmp.ne.s32.totalorder %s49, %s50
      %p64 = scmp.eq.s32.totalorder %s16, 2
      %p65 = por %p63, %p64
      %p67 = scmp.ne.s32.totalorder %s50, %s66
      %p68 = scmp.eq.s32.totalorder %s16, 0
      %p69 = por %p67, %p68
      %s71 = sadd.s32 %s70, 1
      %p74 = scmp.eq.s32.totalorder %s10, 2
      %p75 = scmp.ne.s32.totalorder %s70, %s72
      %p76 = scmp.eq.s32.totalorder %s10, 0
      %p77 = por %p75, %p76
      %p78 = scmp.ne.s32.totalorder %s70, %s72
      %p79 = scmp.eq.s32.totalorder %s15, 2
      %p80 = por %p78, %p79
      %p81 = scmp.ne.s32.totalorder %s72, %s73
      %p82 = scmp.eq.s32.totalorder %s15, 0
      %p83 = por %p81, %p82
      %p84 = scmp.ne.s32.totalorder %s72, %s73
      %p85 = scmp.eq.s32.totalorder %s16, 2
      %p86 = por %p84, %p85
      %p88 = scmp.ne.s32.totalorder %s73, %s87
      %p89 = scmp.eq.s32.totalorder %s16, 0
      %p90 = por %p88, %p89
      %s92 = sadd.s32 %s91, 1
      %p95 = scmp.eq.s32.totalorder %s10, 2
      %p96 = scmp.ne.s32.totalorder %s91, %s93
      %p97 = scmp.eq.s32.totalorder %s10, 0
      %p98 = por %p96, %p97
      %p99 = scmp.ne.s32.totalorder %s91, %s93
      %p100 = scmp.eq.s32.totalorder %s15, 2
      %p101 = por %p99, %p100
      %p102 = scmp.ne.s32.totalorder %s93, %s94
      %p103 = scmp.eq.s32.totalorder %s15, 0
      %p104 = por %p102, %p103
      %p105 = scmp.ne.s32.totalorder %s93, %s94
      %p106 = scmp.eq.s32.totalorder %s16, 2
      %p107 = por %p105, %p106
      %p109 = scmp.ne.s32.totalorder %s94, %s108
      %p110 = scmp.eq.s32.totalorder %s16, 0
      %p111 = por %p109, %p110
      %p112 = scmp.le.s32.totalorder 1, %s10
      %p113 = scmp.lt.s32.totalorder %s10, 4
      %p114 = pnand %p112, %p113
      %p115 = pneg %p114
      // Predicated region
      $region9: #{tpu_custom_call.1} parent=5 // pred_check
        _
      $region10: #{tpu_custom_call.1} parent=5 // pred_check_branch
        %117 = sbr.rel (%p114) target = $region12
      $region11: #{tpu_custom_call.1} parent=5 // pred_region
        %s118 = ssub.s32 %s10, 1
        // Predicated region
        $region13: #{tpu_custom_call.1} parent=11 // pred_check
          %p119 = pneg %p83
        $region14: #{tpu_custom_call.1} parent=11 // pred_check_branch
          %121 = sbr.rel (%p119) target = $region16
        $region15: #{tpu_custom_call.1} parent=11 // pred_region
          _
        $region16: #{tpu_custom_call.1} parent=11 // pred_fallthru
          _
      $region12: #{tpu_custom_call.1} parent=5 // pred_fallthru
        _
      %p122 = scmp.lt.s32.totalorder %s10, 3
      // Predicated region
      $region17: #{tpu_custom_call.1} parent=5 // pred_check
        %p123 = pneg %p122
      $region18: #{tpu_custom_call.1} parent=5 // pred_check_branch
        %125 = sbr.rel (%p123) target = $region20
      $region19: #{tpu_custom_call.1} parent=5 // pred_region
        // Predicated region
        $region21: #{tpu_custom_call.1} parent=19 // pred_check
          %p126 = pneg %p30
        $region22: #{tpu_custom_call.1} parent=19 // pred_check_branch
          %128 = sbr.rel (%p126) target = $region24
        $region23: #{tpu_custom_call.1} parent=19 // pred_region
          %s129 = smul.u32 2, %s10
          %s130 = ssub.s32 5, %s129
          %p131 = scmp.lt.s32.totalorder %s130, 2
          %s132 = scalar_select %p131, %s130, 2
          %s133 = smul.u32 128, %s132
          %p134 = scmp.lt.s32.totalorder %s129, 4
          %s135 = scalar_select %p134, %s129, 4
          %s136 = smul.addr %s135, 8
          %s137 = scalar_lea.vmem %s0, %s136
          %s138 = smul.u32 2, %s10
          %s139 = ssub.s32 5, %s138
          %p140 = scmp.lt.s32.totalorder %s139, 2
          %s141 = scalar_select %p140, %s139, 2
          %s142 = smul.u32 128, %s141
        $region24: #{tpu_custom_call.1} parent=19 // pred_fallthru
          _
        // Predicated region
        $region25: #{tpu_custom_call.1} parent=19 // pred_check
          %p143 = pneg %p56
        $region26: #{tpu_custom_call.1} parent=19 // pred_check_branch
          %145 = sbr.rel (%p143) target = $region28
        $region27: #{tpu_custom_call.1} parent=19 // pred_region
          %s146 = smul.u32 2, %s10
          %s147 = ssub.s32 5, %s146
          %p148 = scmp.lt.s32.totalorder %s147, 2
          %s149 = scalar_select %p148, %s147, 2
          %s150 = smul.u32 128, %s149
          %p151 = scmp.lt.s32.totalorder %s146, 4
          %s152 = scalar_select %p151, %s146, 4
          %s153 = smul.addr %s152, 8
          %s154 = scalar_lea.vmem %s1, %s153
          %s155 = smul.u32 2, %s10
          %s156 = ssub.s32 5, %s155
          %p157 = scmp.lt.s32.totalorder %s156, 2
          %s158 = scalar_select %p157, %s156, 2
          %s159 = smul.u32 128, %s158
        $region28: #{tpu_custom_call.1} parent=19 // pred_fallthru
          _
      $region20: #{tpu_custom_call.1} parent=5 // pred_fallthru
        _
      %p160 = scmp.le.s32.totalorder 1, %s10
      %p161 = scmp.lt.s32.totalorder %s10, 4
      %p162 = pnand %p160, %p161
      %p163 = pneg %p162
      // Predicated region
      $region29: #{tpu_custom_call.1} parent=5 // pred_check
        _
      $region30: #{tpu_custom_call.1} parent=5 // pred_check_branch
        %165 = sbr.rel (%p162) target = $region32
      $region31: #{tpu_custom_call.1} parent=5 // pred_region
        %s166 = ssub.s32 %s10, 1
        %s167 = smul.u32 2, %s15
        %s168 = ssub.s32 5, %s167
        %p169 = scmp.lt.s32.totalorder %s168, 2
        %s170 = scalar_select %p169, %s168, 2
        %s171 = smul.u32 128, %s170
        %p172 = scmp.lt.s32.totalorder %s167, 4
        %s173 = scalar_select %p172, %s167, 4
        %s174 = smul.addr %s173, 8
        %s175 = scalar_lea.vmem %s0, %s174
        %p176 = pneg %p36
        %p177 = pneg %p33
        %s178 = smul.u32 2, %s15
        %s179 = ssub.s32 5, %s178
        %p180 = scmp.lt.s32.totalorder %s179, 2
        %s181 = scalar_select %p180, %s179, 2
        %s182 = smul.u32 128, %s181
        %p183 = scmp.lt.s32.totalorder %s178, 4
        %s184 = scalar_select %p183, %s178, 4
        %s185 = smul.addr %s184, 8
        %s186 = scalar_lea.vmem %s1, %s185
        %p187 = pneg %p62
        %p188 = pneg %p59
        %p189 = pneg %p83
        %p190 = pneg %p80
        %p191 = pneg %p104
        %p192 = pneg %p101
        %s193 = smul.u32 2, %s15
        %s194 = ssub.s32 5, %s193
        %p195 = scmp.lt.s32.totalorder %s194, 2
        %s196 = scalar_select %p195, %s194, 2
        %s197 = smul.u32 128, %s196
        %p198 = scmp.lt.s32.totalorder %s193, 4
        %s199 = scalar_select %p198, %s193, 4
        %s200 = smul.addr %s199, 8
        %s201 = scalar_lea.vmem %s0, %s200
        %s202 = smul.u32 2, %s15
        %s203 = ssub.s32 5, %s202
        %p204 = scmp.lt.s32.totalorder %s203, 2
        %s205 = scalar_select %p204, %s203, 2
        %s206 = smul.u32 128, %s205
        %s207 = smul.u32 2, %s15
        %s208 = ssub.s32 5, %s207
        %p209 = scmp.lt.s32.totalorder %s208, 2
        %s210 = scalar_select %p209, %s208, 2
        %s211 = smul.u32 128, %s210
        %p212 = scmp.lt.s32.totalorder %s207, 4
        %s213 = scalar_select %p212, %s207, 4
        %s214 = smul.addr %s213, 8
        %s215 = scalar_lea.vmem %s1, %s214
        %s216 = smul.u32 2, %s15
        %s217 = ssub.s32 5, %s216
        %p218 = scmp.lt.s32.totalorder %s217, 2
        %s219 = scalar_select %p218, %s217, 2
        %s220 = smul.u32 128, %s219
        %p221 = scmp.eq.s32.totalorder %s15, 0
        // Predicated region
        $region33: #{tpu_custom_call.1} parent=31 // pred_check
          %p222 = pneg %p221
        $region34: #{tpu_custom_call.1} parent=31 // pred_check_branch
          %224 = sbr.rel (%p222) target = $region36
        $region35: #{tpu_custom_call.1} parent=31 // pred_region
          %vm225 = vcmask 0
          %226 = vst.msk [vmem:[#allocation2] sm:$0x1] %vm225, 0.0
        $region36: #{tpu_custom_call.1} parent=31 // pred_fallthru
          _
        %v227 = vld [vmem:[%s201] sm:$0xff]
        %v228 = vld [vmem:[%s201 + $0x8] sm:$0xff]
        %229 = vmax.xlane.f32.xlu0 %v227
        %v230 = vpop.xlane.xlu0 %229
        %231 = vmax.xlane.f32.xlu0 %v228
        %v232 = vpop.xlane.xlu0 %231
        %v233 = vsub.f32 %v227, %v230
        %v234 = vsub.f32 %v228, %v232
        %v235 = vmul.f32 %v233, 1.442695
        %v236 = vpow.pop %v235
        %v237 = vmul.f32 %v234, 1.442695
        %v238 = vpow.pop %v237
        %239 = vadd.xlane.f32.xlu0 %v236
        %v240 = vpop.xlane.xlu0 %239
        %241 = vadd.xlane.f32.xlu0 %v238
        %v242 = vpop.xlane.xlu0 %241
        %v243 = vlog2.pop %v240
        %v244 = vmul.f32 %v243, 0.6931472
        %v245 = vlog2.pop %v242
        %v246 = vmul.f32 %v245, 0.6931472
        %v247 = vlaneseq
        %v248 = vand.u32 %v247, 127
        %v249 = vld [vmem:[%s215] sm:$0xff]
        %v250 = vld [vmem:[%s215 + $0x8] sm:$0xff]
        %251 = vset.pattern.permute.xlu0 0
        %252 = vperm.xlu0 %251, %v249
        %v253 = vpop.permute.xlu0 %252
        %254 = vset.pattern.permute.xlu0 0
        %255 = vperm.xlu0 %254, %v250
        %v256 = vpop.permute.xlu0 %255
        %vm257 = vcmp.eq.s32.totalorder %v248, %v253
        %vm258 = vcmp.eq.s32.totalorder %v248, %v256
        %v259 = vsel %vm257, 1, 0
        %v260 = vsel %vm258, 1, 0
        %v261 = vcvt.s32.f32 %v259
        %v262 = vcvt.s32.f32 %v260
        %v263 = vld [vmem:[%s2] sm:$0x1]
        %v264 = vmul.f32 %v261, 0.9
        %v265 = vmul.f32 %v262, 0.9
        %v266 = vadd.f32 %v264, 0.00078125
        %v267 = vadd.f32 %v265, 0.00078125
        %v269 = vlaneseq
        %v270 = vshrl.u32 %v269, 7
        %v271 = vsub.s32 0, %v270
        %v272 = vrot.slane %v263, %v271
        %v274 = vmul.f32 %v272, %v266
        %v275 = vmul.f32 %v272, %v267
        %v276 = vsub.f32 %v233, %v244
        %v277 = vsub.f32 %v234, %v246
        %v278 = vmul.f32 %v274, %v276
        %v279 = vmul.f32 %v275, %v277
        %280 = vadd.xlane.f32.xlu0 %v278
        %v281 = vpop.xlane.xlu0 %280
        %282 = vadd.xlane.f32.xlu0 %v279
        %v283 = vpop.xlane.xlu0 %282
        %v284 = vsub.f32 0.0, %v281
        %v285 = vsub.f32 0.0, %v283
        %s286 = smul.u32 %s15, 16
        %v287 = vlaneseq
        %v288 = vshrl.u32 %v287, 7
        %v289 = vadd.s32 %v288, 8
        %v290 = vstv %s286
        %v291 = vadd.s32 %v290, %v288
        %v292 = vadd.s32 %v290, %v289
        %vm293 = vcmp.lt.s32.totalorder %v291, 40
        %vm294 = vcmp.lt.s32.totalorder %v292, 40
        %v295 = vsel %vm293, %v284, 0.0
        %v296 = vsel %vm294, %v285, 0.0
        %v297 = vld [vmem:[#allocation2] sm:$0x1]
        %v298 = vadd.f32 %v295, %v296
        %v299 = vrot.slane %v298, 4
        %v300 = vadd.f32 %v298, %v299
        %v301 = vrot.slane %v300, 2
        %v302 = vadd.f32 %v300, %v301
        %v303 = vrot.slane %v302, 1
        %v304 = vadd.f32 %v302, %v303
        %v305 = vadd.f32 %v297, %v304
        %vm306 = vcmask 0
        %307 = vst.msk [vmem:[#allocation2] sm:$0x1] %vm306, %v305
        %p308 = scmp.eq.s32.totalorder %s15, 2
        // Predicated region
        $region37: #{tpu_custom_call.1} parent=31 // pred_check
          %p309 = pneg %p308
        $region38: #{tpu_custom_call.1} parent=31 // pred_check_branch
          %311 = sbr.rel (%p309) target = $region40
        $region39: #{tpu_custom_call.1} parent=31 // pred_region
          %v312 = vld [vmem:[#allocation2] sm:$0x1]
          %v313 = vmul.f32 %v312, 0.025
          %v314 = vadd.f32 %v313, 0.0
          %s315 = vtos %v314
          %s316 = scalar_lea.smem [#allocation3], 0
          %317 = sst [smem:[%s316]] %s315
        $region40: #{tpu_custom_call.1} parent=31 // pred_fallthru
          _
        // Predicated region
        $region41: #{tpu_custom_call.1} parent=31 // pred_check
          %p318 = pneg %p101
        $region42: #{tpu_custom_call.1} parent=31 // pred_check_branch
          %320 = sbr.rel (%p318) target = $region44
        $region43: #{tpu_custom_call.1} parent=31 // pred_region
          %s322 = ssub.s32 16, 16
          %323 = vsyncadd [#allocation4], %s322
          %326 = dma.smem_to_hbm [#allocation3], 16, %s3, [#allocation4]
        $region44: #{tpu_custom_call.1} parent=31 // pred_fallthru
          _
        // Predicated region
        $region45: #{tpu_custom_call.1} parent=31 // pred_check
          %p327 = pneg %p101
        $region46: #{tpu_custom_call.1} parent=31 // pred_check_branch
          %329 = sbr.rel (%p327) target = $region48
        $region47: #{tpu_custom_call.1} parent=31 // pred_region
          %330 = dma.done [#allocation4], 16
        $region48: #{tpu_custom_call.1} parent=31 // pred_fallthru
          _
        %331 = sfence
      $region32: #{tpu_custom_call.1} parent=5 // pred_fallthru
        _
      %p332 = scmp.le.s32.totalorder 2, %s10
      // Predicated region
      $region49: #{tpu_custom_call.1} parent=5 // pred_check
        %p333 = pneg %p332
      $region50: #{tpu_custom_call.1} parent=5 // pred_check_branch
        %335 = sbr.rel (%p333) target = $region52
      $region51: #{tpu_custom_call.1} parent=5 // pred_region
        %s336 = ssub.s32 %s10, 2
      $region52: #{tpu_custom_call.1} parent=5 // pred_fallthru
        _
    $region6: #{tpu_custom_call.1} parent=1 // loop_footer
      %s14 = sadd.s32 1, %s10
    $region7: #{tpu_custom_call.1} parent=1 // loop_footer_branch
      %9 = sbr.rel target = $region3
    $region8: #{tpu_custom_call.1} parent=1 // loop_exit
      _
    %337 = vsyncpa [#allocation4], 1
    %s338 = scalar_lea.sflag [#allocation4], 1
    %339 = vsyncpa %s338, 1

</llo_original>
